<compile_context>
chip_gen: v5e
topology: v5e:2x2
jax: 0.10.0
libtpu: 0.0.40
codegen_flags: <defaults>
</compile_context>

<pallas_src>
import numpy as np
import jax
import jax.numpy as jnp
from jax.experimental import pallas as pl
from jax.experimental.pallas import tpu as pltpu

LANE = 128
SUBLANE = 8
MAX_EDGE_TILE = 512


def _round_up(a, b):
    return (a + b - 1) // b * b


def _pad2(a, rows, cols, value=0.0):
    return jnp.pad(a, ((0, rows - a.shape[0]), (0, cols - a.shape[1])),
                   constant_values=value)


# ----------------------------------------------------------------------------
# Fused node_emb + edge_emb kernel
# ----------------------------------------------------------------------------
def _emb_kernel(xn_ref, wn_ref, bn_ref, xe_ref, we_ref, be_ref, hn_ref, he_ref):
    hn_ref[...] = (jnp.dot(xn_ref[...], wn_ref[...],
                           preferred_element_type=jnp.float32) + bn_ref[...])
    he_ref[...] = (jnp.dot(xe_ref[...], we_ref[...],
                           preferred_element_type=jnp.float32) + be_ref[...])


def node_edge_emb(xn, wn, bn, xe, we, be):
    return pl.pallas_call(
        _emb_kernel,
        out_shape=(jax.ShapeDtypeStruct((xn.shape[0], wn.shape[1]), jnp.float32),
                   jax.ShapeDtypeStruct((xe.shape[0], we.shape[1]), jnp.float32)),
    )(xn, wn, bn, xe, we, be)


# ----------------------------------------------------------------------------
# Fused GCNConv layer + BatchNorm(eval) + ReLU kernel.
# Grid: edge tiles (reduction axis), accumulators resident in VMEM scratch.
#   x2      = x @ [W1|W2] + [b1|b2]                      (once, at k == 0)
#   per edge tile k:
#     gat   = onehot(row_k)        built in-kernel        [Et, N]
#     xj2   = gat @ x2                                    [Et, 2D]
#     msg_s = norm * relu(xj_sum + eattr)
#     msg_p = norm * relu(xj_prod + eattr)
#     sca   = onehot(col_k)^T      built in-kernel        [N, Et]
#     acc  += sca @ [msg_s | log(msg_p) | (msg_p==0)]     (MXU scatter-add)
#   finalize (k == last):
#     prod_agg = where(zero_count>0, 0, exp(log_sum)) @ V + bv
#     att      = softmax(att_vec(sigmoid([att1(prod), att2(sum)])) / 2)
#     out      = relu(BN(att_p*prod_agg + att_s*sum_agg))
# ----------------------------------------------------------------------------
def _gcn_layer_kernel(attv_ref,                                   # SMEM [2,2]
                      row_ref, col_ref, norm_ref, eattr_ref, x_ref,
                      w12_ref, b12_ref, v_ref, bv_ref, att1_ref, att2_ref,
                      gamma_ref, beta_ref, mean_ref, var_ref,
                      out_ref,
                      x2_ref, acc_ref):
    k = pl.program_id(0)
    n_nodes = x_ref.shape[0]
    d = out_ref.shape[1]

    @pl.when(k == 0)
    def _init():
        x2_ref[...] = (jnp.dot(x_ref[...], w12_ref[...],
                               preferred_element_type=jnp.float32) + b12_ref[...])
        acc_ref[...] = jnp.zeros_like(acc_ref)

    row = row_ref[...]                              # [Et, 1] int32
    col = col_ref[...]                              # [1, Et] int32
    e_t = row.shape[0]

    # gather one-hot (built from indices, exact 0/1) -> gathered x_sum/x_prod
    gat = (jax.lax.broadcasted_iota(jnp.int32, (e_t, n_nodes), 1)
           == row).astype(jnp.float32)              # [Et, N]
    xj2 = jnp.dot(gat, x2_ref[...], preferred_element_type=jnp.float32)  # [Et, 2D]

    norm = norm_ref[...]                            # [Et, 1]
    e_attr = eattr_ref[...]                         # [Et, D]
    msg_sum = norm * jnp.maximum(xj2[:, :d] + e_attr, 0.0)
    msg_prod = norm * jnp.maximum(xj2[:, d:] + e_attr, 0.0)

    # log-domain scatter-product pieces (ReLU guarantees msg_prod >= 0)
    is_zero = (msg_prod <= 0.0).astype(jnp.float32)
    log_msg = jnp.where(msg_prod > 0.0,
                        jnp.log(jnp.maximum(msg_prod, 1e-30)), 0.0)

    # scatter one-hot; padded edges carry col == N_pad -> all-zero column
    sca = (jax.lax.broadcasted_iota(jnp.int32, (n_nodes, e_t), 0)
           == col).astype(jnp.float32)              # [N, Et]
    payload = jnp.concatenate([msg_sum, log_msg, is_zero], axis=1)  # [Et, 3D]
    acc_ref[...] = acc_ref[...] + jnp.dot(sca, payload,
                                          preferred_element_type=jnp.float32)

    @pl.when(k == pl.num_programs(0) - 1)
    def _finalize():
        acc = acc_ref[...]
        sum_agg = acc[:, :d]
        prod_agg = jnp.where(acc[:, 2 * d:] > 0.5, 0.0, jnp.exp(acc[:, d:2 * d]))
        prod_agg = (jnp.dot(prod_agg, v_ref[...],
                            preferred_element_type=jnp.float32) + bv_ref[...])

        a1 = jnp.dot(prod_agg, att1_ref[...], preferred_element_type=jnp.float32)
        a2 = jnp.dot(sum_agg, att2_ref[...], preferred_element_type=jnp.float32)
        s1 = 1.0 / (1.0 + jnp.exp(-a1))
        s2 = 1.0 / (1.0 + jnp.exp(-a2))
        # att_vec is a 2x2 Linear (torch [out,in] layout), temperature T = 2
        z1 = (s1 * attv_ref[0, 0] + s2 * attv_ref[0, 1]) * 0.5
        z2 = (s1 * attv_ref[1, 0] + s2 * attv_ref[1, 1]) * 0.5
        m = jnp.maximum(z1, z2)
        e1 = jnp.exp(z1 - m)
        e2 = jnp.exp(z2 - m)
        inv_den = 1.0 / (e1 + e2)
        rst = (e1 * inv_den) * prod_agg + (e2 * inv_den) * sum_agg

        # fused BatchNorm (eval, running stats) + ReLU epilogue
        y = ((rst - mean_ref[...]) * jax.lax.rsqrt(var_ref[...] + 1e-5)
             * gamma_ref[...] + beta_ref[...])
        out_ref[...] = jnp.maximum(y, 0.0)


def gcn_layer(x, eattr, row_p, col_p, norm_p, p, bn, *, edge_tile):
    n_pad, d_pad = x.shape
    e_pad = eattr.shape[0]
    nk = e_pad // edge_tile

    def full(shape):
        return pl.BlockSpec(shape, lambda k: (0,) * len(shape))

    smem = pl.BlockSpec(memory_space=pltpu.MemorySpace.SMEM)

    in_specs = [
        smem,                                                    # att_vec
        pl.BlockSpec((edge_tile, 1), lambda k: (k, 0)),          # row
        pl.BlockSpec((1, edge_tile), lambda k: (0, k)),          # col
        pl.BlockSpec((edge_tile, 1), lambda k: (k, 0)),          # norm
        pl.BlockSpec((edge_tile, d_pad), lambda k: (k, 0)),      # eattr
        full((n_pad, d_pad)),                                    # x
        full((d_pad, 2 * d_pad)),                                # w12
        full((1, 2 * d_pad)),                                    # b12
        full((d_pad, d_pad)),                                    # v
        full((1, d_pad)),                                        # bv
        full((d_pad, 1)),                                        # att1
        full((d_pad, 1)),                                        # att2
        full((1, d_pad)),                                        # gamma
        full((1, d_pad)),                                        # beta
        full((1, d_pad)),                                        # mean
        full((1, d_pad)),                                        # var
    ]

    return pl.pallas_call(
        _gcn_layer_kernel,
        out_shape=jax.ShapeDtypeStruct((n_pad, d_pad), jnp.float32),
        grid=(nk,),
        in_specs=in_specs,
        out_specs=full((n_pad, d_pad)),
        scratch_shapes=[pltpu.VMEM((n_pad, 2 * d_pad), jnp.float32),
                        pltpu.VMEM((n_pad, 3 * d_pad), jnp.float32)],
        compiler_params=pltpu.CompilerParams(
            dimension_semantics=("arbitrary",)),
    )(p['att_vec'], row_p, col_p, norm_p, eattr, x,
      p['w12'], p['b12'], p['v'], p['bv'], p['att1'], p['att2'],
      bn['gamma'], bn['beta'], bn['mean'], bn['var'])


# ----------------------------------------------------------------------------
# Fused global_add_pool + 3-layer MLP kernel
# ----------------------------------------------------------------------------
def _pool_mlp_kernel(batch_ref, x_ref, w1_ref, b1_ref, w2_ref, b2_ref,
                     w3_ref, b3_ref, out_ref):
    n_graphs = out_ref.shape[0]
    n_nodes = x_ref.shape[0]
    g_iota = jax.lax.broadcasted_iota(jnp.int32, (n_graphs, n_nodes), 0)
    pool_mat = (g_iota == batch_ref[...]).astype(jnp.float32)      # [G, N]
    pooled = jnp.dot(pool_mat, x_ref[...], preferred_element_type=jnp.float32)
    h = jnp.maximum(jnp.dot(pooled, w1_ref[...],
                            preferred_element_type=jnp.float32) + b1_ref[...], 0.0)
    h = jnp.maximum(jnp.dot(h, w2_ref[...],
                            preferred_element_type=jnp.float32) + b2_ref[...], 0.0)
    out_ref[...] = (jnp.dot(h, w3_ref[...],
                            preferred_element_type=jnp.float32) + b3_ref[...])


def pool_mlp(batch_p, x, w1, b1, w2, b2, w3, b3, n_graphs):
    return pl.pallas_call(
        _pool_mlp_kernel,
        out_shape=jax.ShapeDtypeStruct((n_graphs, w3.shape[1]), jnp.float32),
    )(batch_p, x, w1, b1, w2, b2, w3, b3)


# ----------------------------------------------------------------------------
# Parameter init (deterministic, PyTorch-Linear-style uniform bounds)
# ----------------------------------------------------------------------------
def init_linear(key, in_dim, out_dim, bias=True):
    k1, k2 = jax.random.split(key)
    bound = 1.0 / np.sqrt(in_dim)
    w = jax.random.uniform(k1, (in_dim, out_dim), jnp.float32, -bound, bound)
    b = (jax.random.uniform(k2, (1, out_dim), jnp.float32, -bound, bound)
         if bias else None)
    return w, b


def init_net_params(key, n_nfeat, n_efeat, emb_dim, n_layers, n_class):
    keys = jax.random.split(key, 4 + n_layers)
    params = {}
    params['node_emb_w'], params['node_emb_b'] = init_linear(keys[0], n_nfeat, emb_dim)
    params['edge_emb_w'], params['edge_emb_b'] = init_linear(keys[1], n_efeat, emb_dim)
    params['convs'] = []
    params['bns'] = []
    for l in range(n_layers):
        ks = jax.random.split(keys[4 + l], 6)
        w1, b1 = init_linear(ks[0], emb_dim, emb_dim)
        w2, b2 = init_linear(ks[1], emb_dim, emb_dim)
        v, bv = init_linear(ks[2], emb_dim, emb_dim)
        att1, _ = init_linear(ks[3], emb_dim, 1, bias=False)       # [D, 1]
        att2, _ = init_linear(ks[4], emb_dim, 1, bias=False)       # [D, 1]
        attv, _ = init_linear(ks[5], 2, 2, bias=False)             # [2, 2]
        params['convs'].append(dict(
            w1=w1, b1=b1, w2=w2, b2=b2, v=v, bv=bv,
            att1=att1, att2=att2,
            att_vec=attv.T,                 # torch weight layout [out, in]
        ))
        params['bns'].append(dict(
            gamma=jnp.ones((1, emb_dim), jnp.float32),
            beta=jnp.zeros((1, emb_dim), jnp.float32),
            mean=jnp.zeros((1, emb_dim), jnp.float32),
            var=jnp.ones((1, emb_dim), jnp.float32),
        ))
    params['mlp_w1'], params['mlp_b1'] = init_linear(keys[2], emb_dim, 50)
    km = jax.random.split(keys[3], 2)
    params['mlp_w2'], params['mlp_b2'] = init_linear(km[0], 50, 25)
    params['mlp_w3'], params['mlp_b3'] = init_linear(km[1], 25, n_class)
    return params


def pad_params(params, d_pad):
    """Lane-pad feature dims to d_pad (=128 multiple) and fuse W1|W2."""
    pp = {
        'node_emb_w': _pad2(params['node_emb_w'],
                            params['node_emb_w'].shape[0], d_pad),
        'node_emb_b': _pad2(params['node_emb_b'], 1, d_pad),
        'edge_emb_w': _pad2(params['edge_emb_w'],
                            params['edge_emb_w'].shape[0], d_pad),
        'edge_emb_b': _pad2(params['edge_emb_b'], 1, d_pad),
        'mlp_w1': _pad2(params['mlp_w1'], d_pad, params['mlp_w1'].shape[1]),
        'mlp_b1': params['mlp_b1'],
        'mlp_w2': params['mlp_w2'], 'mlp_b2': params['mlp_b2'],
        'mlp_w3': params['mlp_w3'], 'mlp_b3': params['mlp_b3'],
        'convs': [], 'bns': [],
    }
    for p in params['convs']:
        w12 = jnp.concatenate([_pad2(p['w1'], d_pad, d_pad),
                               _pad2(p['w2'], d_pad, d_pad)], axis=1)
        b12 = jnp.concatenate([_pad2(p['b1'], 1, d_pad),
                               _pad2(p['b2'], 1, d_pad)], axis=1)
        pp['convs'].append(dict(
            w12=w12, b12=b12,
            v=_pad2(p['v'], d_pad, d_pad), bv=_pad2(p['bv'], 1, d_pad),
            att1=_pad2(p['att1'], d_pad, 1), att2=_pad2(p['att2'], d_pad, 1),
            att_vec=p['att_vec']))
    for bn in params['bns']:
        pp['bns'].append(dict(
            gamma=_pad2(bn['gamma'], 1, d_pad),
            beta=_pad2(bn['beta'], 1, d_pad),
            mean=_pad2(bn['mean'], 1, d_pad),
            var=_pad2(bn['var'], 1, d_pad, value=1.0)))   # pad var with 1
    return pp


# ----------------------------------------------------------------------------
# Full Net forward (Pallas kernels + index-bookkeeping glue)
# ----------------------------------------------------------------------------
def net_forward(params, x, edge_index, edge_attr, batch, n_graphs):
    N = x.shape[0]
    E = edge_attr.shape[0]
    emb_dim = params['node_emb_w'].shape[1]

    d_pad = _round_up(emb_dim, LANE)
    n_pad = _round_up(N, SUBLANE)
    edge_tile = min(MAX_EDGE_TILE, _round_up(E, SUBLANE))
    e_pad = _round_up(E, edge_tile)

    pp = pad_params(params, d_pad)

    row = edge_index[0].astype(jnp.int32)
    col = edge_index[1].astype(jnp.int32)
    deg = jnp.zeros((N,), jnp.float32).at[row].add(1.0) + 1.0
    dis = deg ** -0.5
    norm = (dis[row] * dis[col]).astype(jnp.float32)

    # pad graph data; sentinel col == n_pad makes padded edges inert, sentinel
    # batch == n_graphs drops padded nodes from the pooling.
    xp = jnp.pad(x, ((0, n_pad - N), (0, 0)))
    ep = jnp.pad(edge_attr, ((0, e_pad - E), (0, 0)))
    row_p = jnp.pad(row, (0, e_pad - E))[:, None]                          # [Ep,1]
    col_p = jnp.pad(col, (0, e_pad - E), constant_values=n_pad)[None, :]   # [1,Ep]
    norm_p = jnp.pad(norm, (0, e_pad - E))[:, None]                        # [Ep,1]
    batch_p = jnp.pad(batch.astype(jnp.int32), (0, n_pad - N),
                      constant_values=n_graphs)[None, :]                   # [1,Np]

    # fused node + edge embeddings
    h_nodes, h_edges = node_edge_emb(xp, pp['node_emb_w'], pp['node_emb_b'],
                                     ep, pp['edge_emb_w'], pp['edge_emb_b'])

    for conv_p, bn_p in zip(pp['convs'], pp['bns']):
        h_nodes = gcn_layer(h_nodes, h_edges, row_p, col_p, norm_p,
                            conv_p, bn_p, edge_tile=edge_tile)
        # TODO(synk): F.dropout in training mode omitted (eval-mode forward).

    return pool_mlp(batch_p, h_nodes,
                    pp['mlp_w1'], pp['mlp_b1'], pp['mlp_w2'], pp['mlp_b2'],
                    pp['mlp_w3'], pp['mlp_b3'], n_graphs)


# ----------------------------------------------------------------------------
# Pure-JAX reference (for numerical sanity check)
# ----------------------------------------------------------------------------
def net_forward_ref(params, x, edge_index, edge_attr, batch, n_graphs):
    N = x.shape[0]
    row, col = edge_index[0], edge_index[1]
    x = x @ params['node_emb_w'] + params['node_emb_b']
    eattr = edge_attr @ params['edge_emb_w'] + params['edge_emb_b']
    deg = jnp.zeros((N,), jnp.float32).at[row].add(1.0) + 1.0
    dis = deg ** -0.5
    norm = (dis[row] * dis[col])[:, None]
    for p, bn in zip(params['convs'], params['bns']):
        x_sum = x @ p['w1'] + p['b1']
        x_prod = x @ p['w2'] + p['b2']
        msg_sum = norm * jax.nn.relu(x_sum[row] + eattr)
        msg_prod = norm * jax.nn.relu(x_prod[row] + eattr)
        sum_agg = jnp.zeros_like(x_sum).at[col].add(msg_sum)
        prod_agg = jnp.ones_like(x_prod).at[col].multiply(msg_prod)
        prod_agg = prod_agg @ p['v'] + p['bv']
        a1 = prod_agg @ p['att1']
        a2 = sum_agg @ p['att2']
        s = jax.nn.sigmoid(jnp.concatenate([a1, a2], axis=1))
        z = (s @ p['att_vec'].T) / 2.0
        att = jax.nn.softmax(z, axis=1)
        x = att[:, 0:1] * prod_agg + att[:, 1:2] * sum_agg
        x = (x - bn['mean']) * jax.lax.rsqrt(bn['var'] + 1e-5) * bn['gamma'] + bn['beta']
        x = jax.nn.relu(x)
    pooled = jax.ops.segment_sum(x, batch, num_segments=n_graphs)
    h = jax.nn.relu(pooled @ params['mlp_w1'] + params['mlp_b1'])
    h = jax.nn.relu(h @ params['mlp_w2'] + params['mlp_b2'])
    return h @ params['mlp_w3'] + params['mlp_b3']


# ----------------------------------------------------------------------------
if __name__ == "__main__":
    # small synthetic graph batch
    N_NODES, N_EDGES, N_GRAPHS = 16, 32, 2
    N_NFEAT, N_EFEAT, EMB_DIM, N_LAYERS, N_CLASS = 3, 2, 32, 2, 10

    key = jax.random.PRNGKey(0)
    k_x, k_ea, k_ei, k_p = jax.random.split(key, 4)

    x = jax.random.normal(k_x, (N_NODES, N_NFEAT), jnp.float32)
    edge_attr = jax.random.normal(k_ea, (N_EDGES, N_EFEAT), jnp.float32)
    edge_index = jax.random.randint(k_ei, (2, N_EDGES), 0, N_NODES, jnp.int32)
    batch = jnp.concatenate([jnp.zeros(N_NODES // 2, jnp.int32),
                             jnp.ones(N_NODES - N_NODES // 2, jnp.int32)])

    params = init_net_params(k_p, N_NFEAT, N_EFEAT, EMB_DIM, N_LAYERS, N_CLASS)

    out = net_forward(params, x, edge_index, edge_attr, batch, N_GRAPHS)
    out = jax.block_until_ready(out)

    ref = jax.block_until_ready(
        net_forward_ref(params, x, edge_index, edge_attr, batch, N_GRAPHS))

    assert out.shape == (N_GRAPHS, N_CLASS)
    np.testing.assert_allclose(np.asarray(out), np.asarray(ref), rtol=1e-3, atol=1e-3)
    print("KERNEL_OK")
</pallas_src>

<mosaic_0001>
module attributes {stable_mosaic.version = 11 : i64} {
  func.func @_emb_kernel(%arg0: memref<16x3xf32, #tpu.memory_space<vmem>>, %arg1: memref<3x128xf32, #tpu.memory_space<vmem>>, %arg2: memref<1x128xf32, #tpu.memory_space<vmem>>, %arg3: memref<32x2xf32, #tpu.memory_space<vmem>>, %arg4: memref<2x128xf32, #tpu.memory_space<vmem>>, %arg5: memref<1x128xf32, #tpu.memory_space<vmem>>, %arg6: memref<16x128xf32, #tpu.memory_space<vmem>>, %arg7: memref<32x128xf32, #tpu.memory_space<vmem>>) attributes {dimension_semantics = [], scalar_prefetch = 0 : i64, scratch_operands = 0 : i64, tpu.core_type = #tpu.core_type<tc>} {
    %c0 = arith.constant 0 : index
    %c0_0 = arith.constant 0 : index
    %0 = vector.load %arg0[%c0, %c0_0] : memref<16x3xf32, #tpu.memory_space<vmem>>, vector<16x3xf32>
    %c0_1 = arith.constant 0 : index
    %c0_2 = arith.constant 0 : index
    %1 = vector.load %arg1[%c0_1, %c0_2] : memref<3x128xf32, #tpu.memory_space<vmem>>, vector<3x128xf32>
    %cst = arith.constant dense<0.000000e+00> : vector<16x128xf32>
    %2 = tpu.matmul %0, %1, %cst {dimension_numbers = #tpu.dot_dimension_numbers<[1], [0], [0], [1], [0, 0, 1, 1], [], []>} : vector<16x3xf32>, vector<3x128xf32>, vector<16x128xf32> -> vector<16x128xf32>
    %c0_3 = arith.constant 0 : index
    %c0_4 = arith.constant 0 : index
    %3 = vector.load %arg2[%c0_3, %c0_4] : memref<1x128xf32, #tpu.memory_space<vmem>>, vector<1x128xf32>
    %4 = vector.broadcast %3 : vector<1x128xf32> to vector<16x128xf32>
    %5 = arith.addf %2, %4 : vector<16x128xf32>
    %c0_5 = arith.constant 0 : index
    %c0_6 = arith.constant 0 : index
    %6 = vector.load %arg6[%c0_5, %c0_6] : memref<16x128xf32, #tpu.memory_space<vmem>>, vector<16x128xf32>
    tpu.vector_store %arg6[%c0_5, %c0_6], %5 {strides = array<i32>} : memref<16x128xf32, #tpu.memory_space<vmem>>, vector<16x128xf32>,
    %c0_7 = arith.constant 0 : index
    %c0_8 = arith.constant 0 : index
    %7 = vector.load %arg3[%c0_7, %c0_8] : memref<32x2xf32, #tpu.memory_space<vmem>>, vector<32x2xf32>
    %c0_9 = arith.constant 0 : index
    %c0_10 = arith.constant 0 : index
    %8 = vector.load %arg4[%c0_9, %c0_10] : memref<2x128xf32, #tpu.memory_space<vmem>>, vector<2x128xf32>
    %cst_11 = arith.constant dense<0.000000e+00> : vector<32x128xf32>
    %9 = tpu.matmul %7, %8, %cst_11 {dimension_numbers = #tpu.dot_dimension_numbers<[1], [0], [0], [1], [0, 0, 1, 1], [], []>} : vector<32x2xf32>, vector<2x128xf32>, vector<32x128xf32> -> vector<32x128xf32>
    %c0_12 = arith.constant 0 : index
    %c0_13 = arith.constant 0 : index
    %10 = vector.load %arg5[%c0_12, %c0_13] : memref<1x128xf32, #tpu.memory_space<vmem>>, vector<1x128xf32>
    %11 = vector.broadcast %10 : vector<1x128xf32> to vector<32x128xf32>
    %12 = arith.addf %9, %11 : vector<32x128xf32>
    %c0_14 = arith.constant 0 : index
    %c0_15 = arith.constant 0 : index
    %13 = vector.load %arg7[%c0_14, %c0_15] : memref<32x128xf32, #tpu.memory_space<vmem>>, vector<32x128xf32>
    tpu.vector_store %arg7[%c0_14, %c0_15], %12 {strides = array<i32>} : memref<32x128xf32, #tpu.memory_space<vmem>>, vector<32x128xf32>,
    return
  }
}

</mosaic_0001>

<llo_original>
// kernel: tpu_custom_call.1
$region0: #{tpu_custom_call.1}
  #allocation0 [shape = 'u32[]', space=smem, size = 0x4, offset = 0x4, fixed_abs, tag = 'smem constant byte address 0x4 - core index']
  #allocation1 [shape = 'u32[72,128]{1,0:T(1,128)}', space=vmem, size = 0x9000, scoped, tag = 'internal scratch']
  %s0 = inlined_call_operand.vmem [shape: f32[16,3], index: 0, kind: input, shape index: {}]
  %s1 = inlined_call_operand.vmem [shape: f32[3,128], index: 1, kind: input, shape index: {}]
  %s2 = inlined_call_operand.vmem [shape: f32[1,128], index: 2, kind: input, shape index: {}]
  %s3 = inlined_call_operand.vmem [shape: f32[32,2], index: 3, kind: input, shape index: {}]
  %s4 = inlined_call_operand.vmem [shape: f32[2,128], index: 4, kind: input, shape index: {}]
  %s5 = inlined_call_operand.vmem [shape: f32[1,128], index: 5, kind: input, shape index: {}]
  %s6 = inlined_call_operand.hbm [shape: f32[16,128], index: 6, kind: output, shape index: {0}]
  %s7 = inlined_call_operand.hbm [shape: f32[32,128], index: 7, kind: output, shape index: {1}]
  %8 = xla_tuple %s6, %s7
  %s9 = sld [smem:[#allocation0]]
  $region42: #{tpu_custom_call.1} parent=0
    _
  %s11 = ssub.s32 1, %s9
  %s12 = scalar_select 0, %s11, %s9
  $region1: #{tpu_custom_call.1} parent=0
    #allocation2 [shape = 'u8[8192]{0}', space=vmem, size = 0x2000, scoped, tag = 'output window, operand 0, single buffered']
    #allocation3 [shape = 's32[1]{0}', space=sflag, size = 0x4, scoped, tag = 'scoped memory for tpu_custom_call.1']
    #allocation4 [shape = 'u8[16384]{0}', space=vmem, size = 0x4000, scoped, tag = 'output window, operand 1, single buffered']
    #allocation5 [shape = 's32[1]{0}', space=sflag, size = 0x4, scoped, tag = 'scoped memory for tpu_custom_call.1']
    %13 = vsyncpa [#allocation3], 0
    %14 = vsyncpa [#allocation5], 0
    // Predicated region
    $region2: #{tpu_custom_call.1} parent=1 // pred_check
      _
    $region3: #{tpu_custom_call.1} parent=1 // pred_check_branch
      %16 = sbr.rel (0) target = $region5
    $region4: #{tpu_custom_call.1} parent=1 // pred_region
      _
    $region5: #{tpu_custom_call.1} parent=1 // pred_fallthru
      _
    // Predicated region
    $region6: #{tpu_custom_call.1} parent=1 // pred_check
      _
    $region7: #{tpu_custom_call.1} parent=1 // pred_check_branch
      %18 = sbr.rel (0) target = $region9
    $region8: #{tpu_custom_call.1} parent=1 // pred_region
      _
    $region9: #{tpu_custom_call.1} parent=1 // pred_fallthru
      _
    // Predicated region
    $region10: #{tpu_custom_call.1} parent=1 // pred_check
      _
    $region11: #{tpu_custom_call.1} parent=1 // pred_check_branch
      %20 = sbr.rel (0) target = $region13
    $region12: #{tpu_custom_call.1} parent=1 // pred_region
      _
    $region13: #{tpu_custom_call.1} parent=1 // pred_fallthru
      _
    // Predicated region
    $region14: #{tpu_custom_call.1} parent=1 // pred_check
      _
    $region15: #{tpu_custom_call.1} parent=1 // pred_check_branch
      %22 = sbr.rel (0) target = $region17
    $region16: #{tpu_custom_call.1} parent=1 // pred_region
      _
    $region17: #{tpu_custom_call.1} parent=1 // pred_fallthru
      _
    // Predicated region
    $region18: #{tpu_custom_call.1} parent=1 // pred_check
      _
    $region19: #{tpu_custom_call.1} parent=1 // pred_check_branch
      %24 = sbr.rel (0) target = $region21
    $region20: #{tpu_custom_call.1} parent=1 // pred_region
      _
    $region21: #{tpu_custom_call.1} parent=1 // pred_fallthru
      _
    // Predicated region
    $region22: #{tpu_custom_call.1} parent=1 // pred_check
      _
    $region23: #{tpu_custom_call.1} parent=1 // pred_check_branch
      %26 = sbr.rel (0) target = $region25
    $region24: #{tpu_custom_call.1} parent=1 // pred_region
      _
    $region25: #{tpu_custom_call.1} parent=1 // pred_fallthru
      _
    %v27 = vld [vmem:[%s0] sm:$0xff]
    %v28 = vld [vmem:[%s0 + $0x8] sm:$0xff]
    %v29 = vld [vmem:[%s1] sm:$0x7]
    %v30 = vld [vmem:[%s2] sm:$0x1]
    %v32 = vperm.slane %v30, 0
    %vm34 = vcmask 23552
    %v36 = vsel %vm34, %v27, 0
    %v39 = vsel %vm34, %v28, 0
    %vm41 = vcmask 1042432
    %v43 = vsel %vm41, %v29, 0
    %45 = vmatpush.msra.mxu0 0.0
    %46 = vmatpush.msra.mxu0 0.0
    %47 = vmatpush.msra.mxu0 0.0
    %48 = vmatpush.msra.mxu0 0.0
    %49 = vmatpush.msra.mxu0 0.0
    %50 = vmatpush.msra.mxu0 0.0
    %51 = vmatpush.msra.mxu0 0.0
    %52 = vmatpush.msra.mxu0 0.0
    %53 = vmatpush.msra.mxu0 0.0
    %54 = vmatpush.msra.mxu0 0.0
    %55 = vmatpush.msra.mxu0 0.0
    %56 = vmatpush.msra.mxu0 0.0
    %57 = vmatpush.msra.mxu0 0.0
    %58 = vmatpush.msra.mxu0 0.0
    %59 = vmatpush.msra.mxu0 0.0
    %60 = vmatpush.msra.mxu0 %v43
    %61 = vmatmul.f32.gmra.mxu0 %v36
    %v62 = vpop.f32.mrf.mxu0
    %v63 = vadd.f32 %v32, %v62
    %64 = vmatmul.f32.gmra.mxu0 %v39
    %v65 = vpop.f32.mrf.mxu0
    %v66 = vadd.f32 %v32, %v65
    %67 = vdwg.mxu0
    %68 = vst [vmem:[#allocation2] sm:$0xff] %v63
    %69 = vst [vmem:[#allocation2 + $0x8] sm:$0xff] %v66
    %v70 = vld [vmem:[%s3] sm:$0xff]
    %v71 = vld [vmem:[%s3 + $0x8] sm:$0xff]
    %v72 = vld [vmem:[%s3 + $0x10] sm:$0xff]
    %v73 = vld [vmem:[%s3 + $0x18] sm:$0xff]
    %v74 = vld [vmem:[%s4] sm:$0x3]
    %v75 = vld [vmem:[%s5] sm:$0x1]
    %v77 = vperm.slane %v75, 0
    %vm79 = vcmask 15360
    %v81 = vsel %vm79, %v70, 0
    %v84 = vsel %vm79, %v71, 0
    %v87 = vsel %vm79, %v72, 0
    %v90 = vsel %vm79, %v73, 0
    %vm92 = vcmask 1041408
    %v94 = vsel %vm92, %v74, 0
    %96 = vmatpush.msra.mxu0 0.0
    %97 = vmatpush.msra.mxu0 0.0
    %98 = vmatpush.msra.mxu0 0.0
    %99 = vmatpush.msra.mxu0 0.0
    %100 = vmatpush.msra.mxu0 0.0
    %101 = vmatpush.msra.mxu0 0.0
    %102 = vmatpush.msra.mxu0 0.0
    %103 = vmatpush.msra.mxu0 0.0
    %104 = vmatpush.msra.mxu0 0.0
    %105 = vmatpush.msra.mxu0 0.0
    %106 = vmatpush.msra.mxu0 0.0
    %107 = vmatpush.msra.mxu0 0.0
    %108 = vmatpush.msra.mxu0 0.0
    %109 = vmatpush.msra.mxu0 0.0
    %110 = vmatpush.msra.mxu0 0.0
    %111 = vmatpush.msra.mxu0 %v94
    %112 = vmatmul.f32.gmra.mxu0 %v81
    %v113 = vpop.f32.mrf.mxu0
    %v114 = vadd.f32 %v77, %v113
    %115 = vmatmul.f32.gmra.mxu0 %v84
    %v116 = vpop.f32.mrf.mxu0
    %v117 = vadd.f32 %v77, %v116
    %118 = vmatmul.f32.gmra.mxu0 %v87
    %v119 = vpop.f32.mrf.mxu0
    %v120 = vadd.f32 %v77, %v119
    %121 = vmatmul.f32.gmra.mxu0 %v90
    %v122 = vpop.f32.mrf.mxu0
    %v123 = vadd.f32 %v77, %v122
    %124 = vdwg.mxu0
    %125 = vst [vmem:[#allocation4] sm:$0xff] %v114
    %126 = vst [vmem:[#allocation4 + $0x8] sm:$0xff] %v117
    %127 = vst [vmem:[#allocation4 + $0x10] sm:$0xff] %v120
    %128 = vst [vmem:[#allocation4 + $0x18] sm:$0xff] %v123
    // Predicated region
    $region26: #{tpu_custom_call.1} parent=1 // pred_check
      _
    $region27: #{tpu_custom_call.1} parent=1 // pred_check_branch
      %130 = sbr.rel (0) target = $region29
    $region28: #{tpu_custom_call.1} parent=1 // pred_region
      %132 = vsyncadd [#allocation3], 0
      %s133 = sshll.u32 [#allocation2], 4
      %s134 = int_to_ptr.vmem [resolvable:$true] %s133
      %s135 = sshll.u32 %s6, 4
      %s136 = int_to_ptr.hbm [resolvable:$true] %s135
      %141 = dma.vmem_to_hbm [thread:$0]  %s134, 256, %s136, [#allocation3], 128, 128, 8
    $region29: #{tpu_custom_call.1} parent=1 // pred_fallthru
      _
    // Predicated region
    $region30: #{tpu_custom_call.1} parent=1 // pred_check
      _
    $region31: #{tpu_custom_call.1} parent=1 // pred_check_branch
      %143 = sbr.rel (0) target = $region33
    $region32: #{tpu_custom_call.1} parent=1 // pred_region
      %145 = vsyncadd [#allocation5], 0
      %s146 = sshll.u32 [#allocation4], 4
      %s147 = int_to_ptr.vmem [resolvable:$true] %s146
      %s148 = sshll.u32 %s7, 4
      %s149 = int_to_ptr.hbm [resolvable:$true] %s148
      %154 = dma.vmem_to_hbm [thread:$0]  %s147, 512, %s149, [#allocation5], 128, 128, 8
    $region33: #{tpu_custom_call.1} parent=1 // pred_fallthru
      _
    // Predicated region
    $region34: #{tpu_custom_call.1} parent=1 // pred_check
      _
    $region35: #{tpu_custom_call.1} parent=1 // pred_check_branch
      %156 = sbr.rel (0) target = $region37
    $region36: #{tpu_custom_call.1} parent=1 // pred_region
      %158 = dma.done [#allocation3], 256
    $region37: #{tpu_custom_call.1} parent=1 // pred_fallthru
      _
    // Predicated region
    $region38: #{tpu_custom_call.1} parent=1 // pred_check
      _
    $region39: #{tpu_custom_call.1} parent=1 // pred_check_branch
      %160 = sbr.rel (0) target = $region41
    $region40: #{tpu_custom_call.1} parent=1 // pred_region
      %162 = dma.done [#allocation5], 512
    $region41: #{tpu_custom_call.1} parent=1 // pred_fallthru
      _
    %163 = vsyncpa [#allocation3], 1
    %164 = vsyncpa [#allocation5], 1

</llo_original>
